<compile_context>
chip_gen: v7x
topology: tpu7x:2x2x1
jax: 0.10.0
libtpu: 0.0.40
codegen_flags: <defaults>
</compile_context>

<pallas_src>
import numpy as np

import jax
import jax.numpy as jnp
from jax.experimental import pallas as pl
from jax.experimental.pallas import tpu as pltpu


def _round_up(x, m):
    return (x + m - 1) // m * m


def _make_mlp_kernel(n_inputs, dot_dtype):
    """Fused (concat + 3-layer MLP) kernel.

    Ref order: x_0..x_{n-1}, w1_0..w1_{n-1}, b1, w2, b2, w3, b3, out.
    """

    def kernel(*refs):
        x_refs = refs[:n_inputs]
        w1_refs = refs[n_inputs:2 * n_inputs]
        b1_ref, w2_ref, b2_ref, w3_ref, b3_ref, o_ref = refs[2 * n_inputs:]

        # fc1 (fused concat): accumulate per-input partial dots in f32.
        acc = None
        for x_ref, w1_ref in zip(x_refs, w1_refs):
            part = jnp.dot(
                x_ref[...].astype(dot_dtype),
                w1_ref[...],
                preferred_element_type=jnp.float32,
            )
            acc = part if acc is None else acc + part
        h1 = jnp.maximum(acc + b1_ref[...], 0.0)

        # fc2 + relu
        h2 = jnp.dot(
            h1.astype(dot_dtype),
            w2_ref[...],
            preferred_element_type=jnp.float32,
        ) + b2_ref[...]
        h2 = jnp.maximum(h2, 0.0)

        # fc3 + 2*tanh (f32 elementwise; tanh goes to the EUP)
        h3 = jnp.dot(
            h2.astype(dot_dtype),
            w3_ref[...],
            preferred_element_type=jnp.float32,
        ) + b3_ref[...]
        # Output columns are zero-padded to a 128 multiple -> unmasked lane-dense vst.
        o_ref[...] = (2.0 * jnp.tanh(h3)).astype(o_ref.dtype)

    return kernel


def concat_discriminator_forward(params, *inputs, dim=1,
                                 dot_dtype=jnp.bfloat16, block_m=512):
    """ConcatDiscriminator.forward: concat along `dim` then 3-layer MLP.

    params: dict with w1 (D_in,H), b1 (1,H), w2 (H,H), b2 (1,H), w3 (H,O), b3 (1,O).
    dot_dtype: dtype fed to the MXU (bf16 by default; accumulation is always f32).
    """
    if dim != 1:
        # Non-feature concat (e.g. dim=0 batch concat): do it in the wrapper and
        # feed the kernel a single input — the feature dim is untouched.
        inputs = (jnp.concatenate([jnp.asarray(x) for x in inputs], axis=dim),)
    inputs = [jnp.asarray(x, dtype=jnp.float32) for x in inputs]

    B = inputs[0].shape[0]
    O = params["w3"].shape[1]

    # Split W1 rows to match each input's feature chunk (fused concat).
    feats = [int(x.shape[1]) for x in inputs]
    assert sum(feats) == params["w1"].shape[0], "concat width != fc1 in_features"
    splits = list(np.cumsum(feats)[:-1])
    w1_chunks = jnp.split(params["w1"], splits, axis=0) if splits else [params["w1"]]

    # Weights in dot_dtype (halves resident-weight bytes for bf16); biases stay f32.
    w1_chunks = [w.astype(dot_dtype) for w in w1_chunks]
    w2 = params["w2"].astype(dot_dtype)
    b1 = params["b1"].astype(jnp.float32)
    b2 = params["b2"].astype(jnp.float32)

    # Lane-dense output: pad fc3 columns to a multiple of 128 (zeros -> 2*tanh(0)=0).
    O_pad = max(128, _round_up(O, 128))
    w3 = jnp.pad(params["w3"], ((0, 0), (0, O_pad - O))).astype(dot_dtype)
    b3 = jnp.pad(params["b3"], ((0, 0), (0, O_pad - O))).astype(jnp.float32)

    # Batch tiling: stream (tm, D_i) tiles of each input and (tm, O_pad) out tiles;
    # keep the small weights resident across grid steps via constant index_maps.
    tm = B if B <= block_m else block_m
    tm = _round_up(tm, 8)                       # f32 sublane multiple
    b_pad = _round_up(B, tm)
    if b_pad != B:
        inputs = [jnp.pad(x, ((0, b_pad - B), (0, 0))) for x in inputs]
    grid = (b_pad // tm,)

    n = len(inputs)
    kernel = _make_mlp_kernel(n, dot_dtype)

    const_map = lambda i: (0, 0)
    x_specs = [pl.BlockSpec((tm, f), lambda i: (i, 0)) for f in feats]
    w_specs = (
        [pl.BlockSpec(w.shape, const_map) for w in w1_chunks]
        + [
            pl.BlockSpec(b1.shape, const_map),
            pl.BlockSpec(w2.shape, const_map),
            pl.BlockSpec(b2.shape, const_map),
            pl.BlockSpec(w3.shape, const_map),
            pl.BlockSpec(b3.shape, const_map),
        ]
    )

    out = pl.pallas_call(
        kernel,
        out_shape=jax.ShapeDtypeStruct((b_pad, O_pad), jnp.float32),
        grid=grid,
        in_specs=x_specs + w_specs,
        out_specs=pl.BlockSpec((tm, O_pad), lambda i: (i, 0)),
        compiler_params=pltpu.CompilerParams(
            dimension_semantics=("parallel",),   # v7x: shard batch across both TCs
        ),
    )(*inputs, *w1_chunks, b1, w2, b2, w3, b3)

    return out[:B, :O]


def init_params(key, num_input, num_hidden, num_output=2):
    """Deterministic init mimicking nn.Linear default (uniform +-1/sqrt(fan_in)).

    Weights are stored transposed: (in_features, out_features).
    """
    ks = jax.random.split(key, 6)

    def linear(kw, kb, fan_in, fan_out):
        bound = 1.0 / jnp.sqrt(jnp.float32(fan_in))
        w = jax.random.uniform(kw, (fan_in, fan_out), jnp.float32, -bound, bound)
        b = jax.random.uniform(kb, (1, fan_out), jnp.float32, -bound, bound)
        return w, b

    w1, b1 = linear(ks[0], ks[1], num_input, num_hidden)
    w2, b2 = linear(ks[2], ks[3], num_hidden, num_hidden)
    w3, b3 = linear(ks[4], ks[5], num_hidden, num_output)
    return {"w1": w1, "b1": b1, "w2": w2, "b2": b2, "w3": w3, "b3": b3}


def _reference_forward(params, *inputs, dim=1):
    x = jnp.concatenate(inputs, axis=dim).astype(jnp.float32)
    h1 = jnp.maximum(x @ params["w1"] + params["b1"], 0.0)
    h2 = jnp.maximum(h1 @ params["w2"] + params["b2"], 0.0)
    return 2.0 * jnp.tanh(h2 @ params["w3"] + params["b3"])


# TODO(synk): training-time dropout path (nn.Dropout p=0.2) not implemented;
# this kernel reproduces the dropout=False / eval forward only.


if __name__ == "__main__":
    # Small shapes: two inputs concatenated along dim=1 (e.g. obs + action).
    batch = 8
    d_a, d_b = 16, 16          # num_input = 32 after concat
    num_hidden = 32
    num_output = 2

    key = jax.random.PRNGKey(0)
    k_a, k_b, k_p = jax.random.split(key, 3)
    xa = jax.random.normal(k_a, (batch, d_a), jnp.float32)
    xb = jax.random.normal(k_b, (batch, d_b), jnp.float32)

    params = init_params(k_p, d_a + d_b, num_hidden, num_output)
    ref = _reference_forward(params, xa, xb, dim=1)

    # Exact-precision path (f32 matmuls) — tight tolerance vs. reference.
    out_f32 = concat_discriminator_forward(params, xa, xb, dim=1,
                                           dot_dtype=jnp.float32)
    out_f32 = jax.block_until_ready(out_f32)
    assert out_f32.shape == (batch, num_output)
    assert jnp.allclose(out_f32, ref, atol=1e-5, rtol=1e-5)

    # Default fast path (bf16 matmuls, f32 accumulation) — looser tolerance.
    out_bf16 = concat_discriminator_forward(params, xa, xb, dim=1)
    out_bf16 = jax.block_until_ready(out_bf16)
    assert out_bf16.shape == (batch, num_output)
    assert jnp.allclose(out_bf16, ref, atol=5e-2, rtol=0.0)

    # dim=0 fallback path (wrapper-side concat, single kernel input).
    params0 = init_params(k_p, d_a, num_hidden, num_output)
    out_dim0 = concat_discriminator_forward(params0, xa, xa, dim=0,
                                            dot_dtype=jnp.float32)
    out_dim0 = jax.block_until_ready(out_dim0)
    ref_dim0 = _reference_forward(params0, xa, xa, dim=0)
    assert out_dim0.shape == (2 * batch, num_output)
    assert jnp.allclose(out_dim0, ref_dim0, atol=1e-5, rtol=1e-5)

    print("KERNEL_OK")
</pallas_src>

<mosaic_0001>
module attributes {stable_mosaic.version = 11 : i64} {
  func.func @kernel(%arg0: i32, %arg1: memref<8x16xf32, #tpu.memory_space<vmem>>, %arg2: memref<8x16xf32, #tpu.memory_space<vmem>>, %arg3: memref<16x32xf32, #tpu.memory_space<vmem>>, %arg4: memref<16x32xf32, #tpu.memory_space<vmem>>, %arg5: memref<1x32xf32, #tpu.memory_space<vmem>>, %arg6: memref<32x32xf32, #tpu.memory_space<vmem>>, %arg7: memref<1x32xf32, #tpu.memory_space<vmem>>, %arg8: memref<32x128xf32, #tpu.memory_space<vmem>>, %arg9: memref<1x128xf32, #tpu.memory_space<vmem>>, %arg10: memref<8x128xf32, #tpu.memory_space<vmem>>) attributes {dimension_semantics = [#tpu.dimension_semantics<parallel>], iteration_bounds = array<i64: 1>, scalar_prefetch = 0 : i64, scratch_operands = 0 : i64, tpu.core_type = #tpu.core_type<tc>, window_params = [{transform_indices = @transform_0, window_bounds = array<i64: 8, 16>}, {transform_indices = @transform_1, window_bounds = array<i64: 8, 16>}, {pipeline_mode = #tpu.pipeline_mode<synchronous>, transform_indices = @transform_2, window_bounds = array<i64: 16, 32>}, {pipeline_mode = #tpu.pipeline_mode<synchronous>, transform_indices = @transform_3, window_bounds = array<i64: 16, 32>}, {pipeline_mode = #tpu.pipeline_mode<synchronous>, transform_indices = @transform_4, window_bounds = array<i64: 1, 32>}, {pipeline_mode = #tpu.pipeline_mode<synchronous>, transform_indices = @transform_5, window_bounds = array<i64: 32, 32>}, {pipeline_mode = #tpu.pipeline_mode<synchronous>, transform_indices = @transform_6, window_bounds = array<i64: 1, 32>}, {pipeline_mode = #tpu.pipeline_mode<synchronous>, transform_indices = @transform_7, window_bounds = array<i64: 32, 128>}, {pipeline_mode = #tpu.pipeline_mode<synchronous>, transform_indices = @transform_8, window_bounds = array<i64: 1, 128>}, {transform_indices = @transform_9, window_bounds = array<i64: 8, 128>}]} {
    %c0 = arith.constant 0 : index
    %c0_0 = arith.constant 0 : index
    %0 = vector.load %arg1[%c0, %c0_0] : memref<8x16xf32, #tpu.memory_space<vmem>>, vector<8x16xf32>
    %c0_1 = arith.constant 0 : index
    %c0_2 = arith.constant 0 : index
    %1 = vector.load %arg3[%c0_1, %c0_2] : memref<16x32xf32, #tpu.memory_space<vmem>>, vector<16x32xf32>
    %cst = arith.constant dense<0.000000e+00> : vector<8x32xf32>
    %2 = tpu.matmul %0, %1, %cst {dimension_numbers = #tpu.dot_dimension_numbers<[1], [0], [0], [1], [0, 0, 1, 1], [], []>} : vector<8x16xf32>, vector<16x32xf32>, vector<8x32xf32> -> vector<8x32xf32>
    %c0_3 = arith.constant 0 : index
    %c0_4 = arith.constant 0 : index
    %3 = vector.load %arg2[%c0_3, %c0_4] : memref<8x16xf32, #tpu.memory_space<vmem>>, vector<8x16xf32>
    %c0_5 = arith.constant 0 : index
    %c0_6 = arith.constant 0 : index
    %4 = vector.load %arg4[%c0_5, %c0_6] : memref<16x32xf32, #tpu.memory_space<vmem>>, vector<16x32xf32>
    %cst_7 = arith.constant dense<0.000000e+00> : vector<8x32xf32>
    %5 = tpu.matmul %3, %4, %cst_7 {dimension_numbers = #tpu.dot_dimension_numbers<[1], [0], [0], [1], [0, 0, 1, 1], [], []>} : vector<8x16xf32>, vector<16x32xf32>, vector<8x32xf32> -> vector<8x32xf32>
    %6 = arith.addf %2, %5 : vector<8x32xf32>
    %c0_8 = arith.constant 0 : index
    %c0_9 = arith.constant 0 : index
    %7 = vector.load %arg5[%c0_8, %c0_9] : memref<1x32xf32, #tpu.memory_space<vmem>>, vector<1x32xf32>
    %8 = vector.broadcast %7 : vector<1x32xf32> to vector<8x32xf32>
    %9 = arith.addf %6, %8 : vector<8x32xf32>
    %cst_10 = arith.constant 0.000000e+00 : f32
    %10 = vector.broadcast %cst_10 : f32 to vector<8x32xf32>
    %11 = arith.maximumf %9, %10 : vector<8x32xf32>
    %c0_11 = arith.constant 0 : index
    %c0_12 = arith.constant 0 : index
    %12 = vector.load %arg6[%c0_11, %c0_12] : memref<32x32xf32, #tpu.memory_space<vmem>>, vector<32x32xf32>
    %cst_13 = arith.constant dense<0.000000e+00> : vector<8x32xf32>
    %13 = tpu.matmul %11, %12, %cst_13 {dimension_numbers = #tpu.dot_dimension_numbers<[1], [0], [0], [1], [0, 0, 1, 1], [], []>} : vector<8x32xf32>, vector<32x32xf32>, vector<8x32xf32> -> vector<8x32xf32>
    %c0_14 = arith.constant 0 : index
    %c0_15 = arith.constant 0 : index
    %14 = vector.load %arg7[%c0_14, %c0_15] : memref<1x32xf32, #tpu.memory_space<vmem>>, vector<1x32xf32>
    %15 = vector.broadcast %14 : vector<1x32xf32> to vector<8x32xf32>
    %16 = arith.addf %13, %15 : vector<8x32xf32>
    %cst_16 = arith.constant 0.000000e+00 : f32
    %17 = vector.broadcast %cst_16 : f32 to vector<8x32xf32>
    %18 = arith.maximumf %16, %17 : vector<8x32xf32>
    %c0_17 = arith.constant 0 : index
    %c0_18 = arith.constant 0 : index
    %19 = vector.load %arg8[%c0_17, %c0_18] : memref<32x128xf32, #tpu.memory_space<vmem>>, vector<32x128xf32>
    %cst_19 = arith.constant dense<0.000000e+00> : vector<8x128xf32>
    %20 = tpu.matmul %18, %19, %cst_19 {dimension_numbers = #tpu.dot_dimension_numbers<[1], [0], [0], [1], [0, 0, 1, 1], [], []>} : vector<8x32xf32>, vector<32x128xf32>, vector<8x128xf32> -> vector<8x128xf32>
    %c0_20 = arith.constant 0 : index
    %c0_21 = arith.constant 0 : index
    %21 = vector.load %arg9[%c0_20, %c0_21] : memref<1x128xf32, #tpu.memory_space<vmem>>, vector<1x128xf32>
    %22 = vector.broadcast %21 : vector<1x128xf32> to vector<8x128xf32>
    %23 = arith.addf %20, %22 : vector<8x128xf32>
    %24 = math.tanh %23 : vector<8x128xf32>
    %cst_22 = arith.constant 2.000000e+00 : f32
    %25 = vector.broadcast %cst_22 : f32 to vector<8x128xf32>
    %26 = arith.mulf %25, %24 : vector<8x128xf32>
    %c0_23 = arith.constant 0 : index
    %c0_24 = arith.constant 0 : index
    %27 = vector.load %arg10[%c0_23, %c0_24] : memref<8x128xf32, #tpu.memory_space<vmem>>, vector<8x128xf32>
    tpu.vector_store %arg10[%c0_23, %c0_24], %26 {strides = array<i32>} : memref<8x128xf32, #tpu.memory_space<vmem>>, vector<8x128xf32>,
    return
  }
  func.func @transform_0(%arg0: i32) -> (i32, i32) {
    %c0_i32 = arith.constant 0 : i32
    %c0_i32_0 = arith.constant 0 : i32
    return %arg0, %c0_i32 : i32, i32
  }
  func.func @transform_1(%arg0: i32) -> (i32, i32) {
    %c0_i32 = arith.constant 0 : i32
    %c0_i32_0 = arith.constant 0 : i32
    return %arg0, %c0_i32 : i32, i32
  }
  func.func @transform_2(%arg0: i32) -> (i32, i32) {
    %c0_i32 = arith.constant 0 : i32
    %c0_i32_0 = arith.constant 0 : i32
    %c0_i32_1 = arith.constant 0 : i32
    return %c0_i32, %c0_i32_0 : i32, i32
  }
  func.func @transform_3(%arg0: i32) -> (i32, i32) {
    %c0_i32 = arith.constant 0 : i32
    %c0_i32_0 = arith.constant 0 : i32
    %c0_i32_1 = arith.constant 0 : i32
    return %c0_i32, %c0_i32_0 : i32, i32
  }
  func.func @transform_4(%arg0: i32) -> (i32, i32) {
    %c0_i32 = arith.constant 0 : i32
    %c0_i32_0 = arith.constant 0 : i32
    %c0_i32_1 = arith.constant 0 : i32
    return %c0_i32, %c0_i32_0 : i32, i32
  }
  func.func @transform_5(%arg0: i32) -> (i32, i32) {
    %c0_i32 = arith.constant 0 : i32
    %c0_i32_0 = arith.constant 0 : i32
    %c0_i32_1 = arith.constant 0 : i32
    return %c0_i32, %c0_i32_0 : i32, i32
  }
  func.func @transform_6(%arg0: i32) -> (i32, i32) {
    %c0_i32 = arith.constant 0 : i32
    %c0_i32_0 = arith.constant 0 : i32
    %c0_i32_1 = arith.constant 0 : i32
    return %c0_i32, %c0_i32_0 : i32, i32
  }
  func.func @transform_7(%arg0: i32) -> (i32, i32) {
    %c0_i32 = arith.constant 0 : i32
    %c0_i32_0 = arith.constant 0 : i32
    %c0_i32_1 = arith.constant 0 : i32
    return %c0_i32, %c0_i32_0 : i32, i32
  }
  func.func @transform_8(%arg0: i32) -> (i32, i32) {
    %c0_i32 = arith.constant 0 : i32
    %c0_i32_0 = arith.constant 0 : i32
    %c0_i32_1 = arith.constant 0 : i32
    return %c0_i32, %c0_i32_0 : i32, i32
  }
  func.func @transform_9(%arg0: i32) -> (i32, i32) {
    %c0_i32 = arith.constant 0 : i32
    %c0_i32_0 = arith.constant 0 : i32
    return %arg0, %c0_i32 : i32, i32
  }
}

</mosaic_0001>

<llo_original>
// kernel: tpu_custom_call.1
$region0: #{tpu_custom_call.1}
  #allocation0 [shape = 'u32[]', space=smem, size = 0x4, offset = 0x4, fixed_abs, tag = 'smem constant byte address 0x4 - core index']
  #allocation1 [shape = 'u32[144,128]{1,0:T(1,128)}', space=vmem, size = 0x12000, scoped, tag = 'internal scratch']
  %s0 = inlined_call_operand.hbm [shape: f32[8,16], index: 0, kind: input, shape index: {}]
  %s1 = inlined_call_operand.hbm [shape: f32[8,16], index: 1, kind: input, shape index: {}]
  %s2 = inlined_call_operand.hbm [shape: f32[16,32], index: 2, kind: input, shape index: {}]
  %s3 = inlined_call_operand.hbm [shape: f32[16,32], index: 3, kind: input, shape index: {}]
  %s4 = inlined_call_operand.vmem [shape: f32[1,32], index: 4, kind: input, shape index: {}]
  %s5 = inlined_call_operand.hbm [shape: f32[32,32], index: 5, kind: input, shape index: {}]
  %s6 = inlined_call_operand.vmem [shape: f32[1,32], index: 6, kind: input, shape index: {}]
  %s7 = inlined_call_operand.hbm [shape: f32[32,128], index: 7, kind: input, shape index: {}]
  %s8 = inlined_call_operand.vmem [shape: f32[1,128], index: 8, kind: input, shape index: {}]
  %s9 = inlined_call_operand.hbm [shape: f32[8,128], index: 9, kind: output, shape index: {}]
  %s10 = sld [smem:[#allocation0]]
  $region70: #{tpu_custom_call.1} parent=0
    _
  %s12 = ssub.s32 1, %s10
  %s13 = scalar_select 0, %s12, %s10
  $region1: #{tpu_custom_call.1} parent=0
    #allocation2 [shape = 'u8[4096]{0}', space=vmem, size = 0x1000, scoped, tag = 'input window, operand 0, single buffered']
    #allocation3 [shape = 's32[1]{0}', space=sflag, size = 0x4, scoped, tag = 'scoped memory for tpu_custom_call.1']
    #allocation4 [shape = 's32[1]{0}', space=sflag, size = 0x4, scoped, tag = 'scoped memory for tpu_custom_call.1']
    #allocation5 [shape = 'u8[4096]{0}', space=vmem, size = 0x1000, scoped, tag = 'input window, operand 1, single buffered']
    #allocation6 [shape = 's32[1]{0}', space=sflag, size = 0x4, scoped, tag = 'scoped memory for tpu_custom_call.1']
    #allocation7 [shape = 'u8[8192]{0}', space=vmem, size = 0x2000, scoped, tag = 'input window, operand 2, single buffered']
    #allocation8 [shape = 'u8[8192]{0}', space=vmem, size = 0x2000, scoped, tag = 'input window, operand 3, single buffered']
    #allocation9 [shape = 's32[1]{0}', space=sflag, size = 0x4, scoped, tag = 'scoped memory for tpu_custom_call.1']
    #allocation10 [shape = 'u8[16384]{0}', space=vmem, size = 0x4000, scoped, tag = 'input window, operand 5, single buffered']
    #allocation11 [shape = 'u8[16384]{0}', space=vmem, size = 0x4000, scoped, tag = 'input window, operand 7, single buffered']
    #allocation12 [shape = 's32[1]{0}', space=sflag, size = 0x4, scoped, tag = 'scoped memory for tpu_custom_call.1']
    #allocation13 [shape = 'u8[4096]{0}', space=vmem, size = 0x1000, scoped, tag = 'output window, operand 0, single buffered']
    %14 = vsyncpa [#allocation3], 0
    %15 = vsyncpa [#allocation6], 0
    %16 = vsyncpa [#allocation9], 0
    %17 = vsyncpa [#allocation12], 0
    %18 = vsyncpa [#allocation4], 0
    // Predicated region
    $region2: #{tpu_custom_call.1} parent=1 // pred_check
      _
    $region3: #{tpu_custom_call.1} parent=1 // pred_check_branch
      %20 = sbr.rel (0) target = $region5
    $region4: #{tpu_custom_call.1} parent=1 // pred_region
      %s22 = ssub.s32 128, 128
      %23 = vsyncadd [#allocation3], %s22
      %s25 = sshll.u32 [#allocation2], 4
      %s26 = int_to_ptr.vmem [resolvable:$true] %s25
      %28 = dma.hbm_to_vmem [thread:$0]  %s0, 128, %s26, [#allocation3]
    $region5: #{tpu_custom_call.1} parent=1 // pred_fallthru
      _
    // Predicated region
    $region6: #{tpu_custom_call.1} parent=1 // pred_check
      _
    $region7: #{tpu_custom_call.1} parent=1 // pred_check_branch
      %30 = sbr.rel (0) target = $region9
    $region8: #{tpu_custom_call.1} parent=1 // pred_region
      %s32 = ssub.s32 128, 128
      %33 = vsyncadd [#allocation6], %s32
      %s35 = sshll.u32 [#allocation5], 4
      %s36 = int_to_ptr.vmem [resolvable:$true] %s35
      %38 = dma.hbm_to_vmem [thread:$0]  %s1, 128, %s36, [#allocation6]
    $region9: #{tpu_custom_call.1} parent=1 // pred_fallthru
      _
    // Predicated region
    $region10: #{tpu_custom_call.1} parent=1 // pred_check
      _
    $region11: #{tpu_custom_call.1} parent=1 // pred_check_branch
      %40 = sbr.rel (0) target = $region13
    $region12: #{tpu_custom_call.1} parent=1 // pred_region
      %s42 = ssub.s32 256, 256
      %43 = vsyncadd [#allocation6], %s42
      %s44 = sshll.u32 [#allocation7], 4
      %s45 = int_to_ptr.vmem [resolvable:$true] %s44
      %50 = dma.hbm_to_vmem [thread:$0]  %s2, 256, %s45, [#allocation6], 128, 128, 8
    $region13: #{tpu_custom_call.1} parent=1 // pred_fallthru
      _
    // Predicated region
    $region14: #{tpu_custom_call.1} parent=1 // pred_check
      _
    $region15: #{tpu_custom_call.1} parent=1 // pred_check_branch
      %52 = sbr.rel (0) target = $region17
    $region16: #{tpu_custom_call.1} parent=1 // pred_region
      %s54 = ssub.s32 256, 256
      %55 = vsyncadd [#allocation9], %s54
      %s56 = sshll.u32 [#allocation8], 4
      %s57 = int_to_ptr.vmem [resolvable:$true] %s56
      %62 = dma.hbm_to_vmem [thread:$0]  %s3, 256, %s57, [#allocation9], 128, 128, 8
    $region17: #{tpu_custom_call.1} parent=1 // pred_fallthru
      _
    // Predicated region
    $region18: #{tpu_custom_call.1} parent=1 // pred_check
      _
    $region19: #{tpu_custom_call.1} parent=1 // pred_check_branch
      %64 = sbr.rel (0) target = $region21
    $region20: #{tpu_custom_call.1} parent=1 // pred_region
      _
    $region21: #{tpu_custom_call.1} parent=1 // pred_fallthru
      _
    // Predicated region
    $region22: #{tpu_custom_call.1} parent=1 // pred_check
      _
    $region23: #{tpu_custom_call.1} parent=1 // pred_check_branch
      %66 = sbr.rel (0) target = $region25
    $region24: #{tpu_custom_call.1} parent=1 // pred_region
      %s68 = ssub.s32 512, 512
      %69 = vsyncadd [#allocation9], %s68
      %s70 = sshll.u32 [#allocation10], 4
      %s71 = int_to_ptr.vmem [resolvable:$true] %s70
      %76 = dma.hbm_to_vmem [thread:$0]  %s5, 512, %s71, [#allocation9], 128, 128, 8
    $region25: #{tpu_custom_call.1} parent=1 // pred_fallthru
      _
    // Predicated region
    $region26: #{tpu_custom_call.1} parent=1 // pred_check
      _
    $region27: #{tpu_custom_call.1} parent=1 // pred_check_branch
      %78 = sbr.rel (0) target = $region29
    $region28: #{tpu_custom_call.1} parent=1 // pred_region
      _
    $region29: #{tpu_custom_call.1} parent=1 // pred_fallthru
      _
    // Predicated region
    $region30: #{tpu_custom_call.1} parent=1 // pred_check
      _
    $region31: #{tpu_custom_call.1} parent=1 // pred_check_branch
      %80 = sbr.rel (0) target = $region33
    $region32: #{tpu_custom_call.1} parent=1 // pred_region
      %s82 = ssub.s32 512, 512
      %83 = vsyncadd [#allocation12], %s82
      %s84 = sshll.u32 [#allocation11], 4
      %s85 = int_to_ptr.vmem [resolvable:$true] %s84
      %90 = dma.hbm_to_vmem [thread:$0]  %s7, 512, %s85, [#allocation12], 128, 128, 8
    $region33: #{tpu_custom_call.1} parent=1 // pred_fallthru
      _
    // Predicated region
    $region34: #{tpu_custom_call.1} parent=1 // pred_check
      _
    $region35: #{tpu_custom_call.1} parent=1 // pred_check_branch
      %92 = sbr.rel (0) target = $region37
    $region36: #{tpu_custom_call.1} parent=1 // pred_region
      _
    $region37: #{tpu_custom_call.1} parent=1 // pred_fallthru
      _
    // Predicated region
    $region38: #{tpu_custom_call.1} parent=1 // pred_check
      _
    $region39: #{tpu_custom_call.1} parent=1 // pred_check_branch
      %94 = sbr.rel (0) target = $region41
    $region40: #{tpu_custom_call.1} parent=1 // pred_region
      %95 = dma.done [#allocation3], 128
    $region41: #{tpu_custom_call.1} parent=1 // pred_fallthru
      _
    // Predicated region
    $region42: #{tpu_custom_call.1} parent=1 // pred_check
      _
    $region43: #{tpu_custom_call.1} parent=1 // pred_check_branch
      %97 = sbr.rel (0) target = $region45
    $region44: #{tpu_custom_call.1} parent=1 // pred_region
      %98 = dma.done [#allocation6], 128
    $region45: #{tpu_custom_call.1} parent=1 // pred_fallthru
      _
    // Predicated region
    $region46: #{tpu_custom_call.1} parent=1 // pred_check
      _
    $region47: #{tpu_custom_call.1} parent=1 // pred_check_branch
      %100 = sbr.rel (0) target = $region49
    $region48: #{tpu_custom_call.1} parent=1 // pred_region
      %101 = dma.done [#allocation6], 256
    $region49: #{tpu_custom_call.1} parent=1 // pred_fallthru
      _
    // Predicated region
    $region50: #{tpu_custom_call.1} parent=1 // pred_check
      _
    $region51: #{tpu_custom_call.1} parent=1 // pred_check_branch
      %103 = sbr.rel (0) target = $region53
    $region52: #{tpu_custom_call.1} parent=1 // pred_region
      %104 = dma.done [#allocation9], 256
    $region53: #{tpu_custom_call.1} parent=1 // pred_fallthru
      _
    // Predicated region
    $region54: #{tpu_custom_call.1} parent=1 // pred_check
      _
    $region55: #{tpu_custom_call.1} parent=1 // pred_check_branch
      %106 = sbr.rel (0) target = $region57
    $region56: #{tpu_custom_call.1} parent=1 // pred_region
      %107 = dma.done [#allocation9], 512
    $region57: #{tpu_custom_call.1} parent=1 // pred_fallthru
      _
    // Predicated region
    $region58: #{tpu_custom_call.1} parent=1 // pred_check
      _
    $region59: #{tpu_custom_call.1} parent=1 // pred_check_branch
      %109 = sbr.rel (0) target = $region61
    $region60: #{tpu_custom_call.1} parent=1 // pred_region
      %110 = dma.done [#allocation12], 512
    $region61: #{tpu_custom_call.1} parent=1 // pred_fallthru
      _
    %v111 = vld [vmem:[#allocation2] sm:$0xff]
    %v112 = vld [vmem:[#allocation7] sm:$0xff]
    %v113 = vld [vmem:[#allocation7 + $0x8] sm:$0xff]
    %v114 = vld [vmem:[#allocation5] sm:$0xff]
    %v115 = vld [vmem:[#allocation8] sm:$0xff]
    %v116 = vld [vmem:[#allocation8 + $0x8] sm:$0xff]
    %vm117 = vcmask 130048
    %v119 = vsel %vm117, %v114, 0
    %121 = vmatprep.subr.mxu0 0.0
    %122 = vmatpush1.msra.mxu0 %v115
    %123 = vmatprep.subr.mxu0 0.0
    %124 = vmatpush1.msra.mxu0 %v116
    %125 = vmatprep.subr.mxu0 0.0
    %126 = vmatpush1.msra.mxu0 0.0
    %127 = vmatprep.subr.mxu0 0.0
    %128 = vmatpush1.msra.mxu0 0.0
    %129 = vmatprep.subr.mxu0 0.0
    %130 = vmatpush1.msra.mxu0 0.0
    %131 = vmatprep.subr.mxu0 0.0
    %132 = vmatpush1.msra.mxu0 0.0
    %133 = vmatprep.subr.mxu0 0.0
    %134 = vmatpush1.msra.mxu0 0.0
    %135 = vmatprep.subr.mxu0 0.0
    %136 = vmatpush1.msra.mxu0 0.0
    %137 = vmatprep.subr.mxu0 0.0
    %138 = vmatpush1.msra.mxu0 0.0
    %139 = vmatprep.subr.mxu0 0.0
    %140 = vmatpush1.msra.mxu0 0.0
    %141 = vmatprep.subr.mxu0 0.0
    %142 = vmatpush1.msra.mxu0 0.0
    %143 = vmatprep.subr.mxu0 0.0
    %144 = vmatpush1.msra.mxu0 0.0
    %145 = vmatprep.subr.mxu0 0.0
    %146 = vmatpush1.msra.mxu0 0.0
    %147 = vmatprep.subr.mxu0 0.0
    %148 = vmatpush1.msra.mxu0 0.0
    %149 = vmatprep.subr.mxu0 0.0
    %150 = vmatpush1.msra.mxu0 0.0
    %151 = vmatprep.subr.mxu0 0.0
    %152 = vmatpush1.msra.mxu0 0.0
    %153 = vmatprep.subr.mxu0 0.0
    %154 = vmatpush1.msra.mxu0 0.0
    %155 = vmatprep.subr.mxu0 0.0
    %156 = vmatpush1.msra.mxu0 0.0
    %157 = vmatprep.subr.mxu0 0.0
    %158 = vmatpush1.msra.mxu0 0.0
    %159 = vmatprep.subr.mxu0 0.0
    %160 = vmatpush1.msra.mxu0 0.0
    %161 = vmatprep.subr.mxu0 0.0
    %162 = vmatpush1.msra.mxu0 0.0
    %163 = vmatprep.subr.mxu0 0.0
    %164 = vmatpush1.msra.mxu0 0.0
    %165 = vmatprep.subr.mxu0 0.0
    %166 = vmatpush1.msra.mxu0 0.0
    %167 = vmatprep.subr.mxu0 0.0
    %168 = vmatpush1.msra.mxu0 0.0
    %169 = vmatprep.subr.mxu0 0.0
    %170 = vmatpush1.msra.mxu0 0.0
    %171 = vmatprep.subr.mxu0 0.0
    %172 = vmatpush1.msra.mxu0 0.0
    %173 = vmatprep.subr.mxu0 0.0
    %174 = vmatpush1.msra.mxu0 0.0
    %175 = vmatprep.subr.mxu0 0.0
    %176 = vmatpush1.msra.mxu0 0.0
    %177 = vmatprep.subr.mxu0 0.0
    %178 = vmatpush1.msra.mxu0 0.0
    %179 = vmatprep.subr.mxu0 0.0
    %180 = vmatpush1.msra.mxu0 0.0
    %181 = vmatprep.subr.mxu0 0.0
    %182 = vmatpush1.msra.mxu0 0.0
    %183 = vmatprep.subr.mxu0 0.0
    %184 = vmatpush1.msra.mxu0 0.0
    %185 = vmatprep.mubr.f32.mxu0 0.0
    %186 = vmatmul.mubr.f32.gmra.mrb[0].mxu0 %v119
    %v187 = vpop.f32.mrb[0].mxu0
    %v188 = vadd.f32 0.0, %v187
    %v189 = vpop.f32.mrb[0].mxu0
    %190 = vdwg.mxu0
    %v192 = vsel %vm117, %v111, 0
    %194 = vmatprep.subr.mxu0 0.0
    %195 = vmatpush1.msra.mxu0 %v112
    %196 = vmatprep.subr.mxu0 0.0
    %197 = vmatpush1.msra.mxu0 %v113
    %198 = vmatprep.subr.mxu0 0.0
    %199 = vmatpush1.msra.mxu0 0.0
    %200 = vmatprep.subr.mxu0 0.0
    %201 = vmatpush1.msra.mxu0 0.0
    %202 = vmatprep.subr.mxu0 0.0
    %203 = vmatpush1.msra.mxu0 0.0
    %204 = vmatprep.subr.mxu0 0.0
    %205 = vmatpush1.msra.mxu0 0.0
    %206 = vmatprep.subr.mxu0 0.0
    %207 = vmatpush1.msra.mxu0 0.0
    %208 = vmatprep.subr.mxu0 0.0
    %209 = vmatpush1.msra.mxu0 0.0
    %210 = vmatprep.subr.mxu0 0.0
    %211 = vmatpush1.msra.mxu0 0.0
    %212 = vmatprep.subr.mxu0 0.0
    %213 = vmatpush1.msra.mxu0 0.0
    %214 = vmatprep.subr.mxu0 0.0
    %215 = vmatpush1.msra.mxu0 0.0
    %216 = vmatprep.subr.mxu0 0.0
    %217 = vmatpush1.msra.mxu0 0.0
    %218 = vmatprep.subr.mxu0 0.0
    %219 = vmatpush1.msra.mxu0 0.0
    %220 = vmatprep.subr.mxu0 0.0
    %221 = vmatpush1.msra.mxu0 0.0
    %222 = vmatprep.subr.mxu0 0.0
    %223 = vmatpush1.msra.mxu0 0.0
    %224 = vmatprep.subr.mxu0 0.0
    %225 = vmatpush1.msra.mxu0 0.0
    %226 = vmatprep.subr.mxu0 0.0
    %227 = vmatpush1.msra.mxu0 0.0
    %228 = vmatprep.subr.mxu0 0.0
    %229 = vmatpush1.msra.mxu0 0.0
    %230 = vmatprep.subr.mxu0 0.0
    %231 = vmatpush1.msra.mxu0 0.0
    %232 = vmatprep.subr.mxu0 0.0
    %233 = vmatpush1.msra.mxu0 0.0
    %234 = vmatprep.subr.mxu0 0.0
    %235 = vmatpush1.msra.mxu0 0.0
    %236 = vmatprep.subr.mxu0 0.0
    %237 = vmatpush1.msra.mxu0 0.0
    %238 = vmatprep.subr.mxu0 0.0
    %239 = vmatpush1.msra.mxu0 0.0
    %240 = vmatprep.subr.mxu0 0.0
    %241 = vmatpush1.msra.mxu0 0.0
    %242 = vmatprep.subr.mxu0 0.0
    %243 = vmatpush1.msra.mxu0 0.0
    %244 = vmatprep.subr.mxu0 0.0
    %245 = vmatpush1.msra.mxu0 0.0
    %246 = vmatprep.subr.mxu0 0.0
    %247 = vmatpush1.msra.mxu0 0.0
    %248 = vmatprep.subr.mxu0 0.0
    %249 = vmatpush1.msra.mxu0 0.0
    %250 = vmatprep.subr.mxu0 0.0
    %251 = vmatpush1.msra.mxu0 0.0
    %252 = vmatprep.subr.mxu0 0.0
    %253 = vmatpush1.msra.mxu0 0.0
    %254 = vmatprep.subr.mxu0 0.0
    %255 = vmatpush1.msra.mxu0 0.0
    %256 = vmatprep.subr.mxu0 0.0
    %257 = vmatpush1.msra.mxu0 0.0
    %258 = vmatprep.mubr.f32.mxu0 0.0
    %259 = vmatmul.mubr.f32.gmra.mrb[0].mxu0 %v192
    %v260 = vpop.f32.mrb[0].mxu0
    %v261 = vadd.f32 %v188, %v260
    %v262 = vpop.f32.mrb[0].mxu0
    %263 = vdwg.mxu0
    %v264 = vld [vmem:[%s4] sm:$0x1]
    %v266 = vlaneseq
    %v267 = vshrl.u32 %v266, 7
    %v268 = vsub.s32 0, %v267
    %v269 = vrot.slane %v264, %v268
    %v271 = vadd.f32 %v261, %v269
    %v272 = vmax.f32 %v271, 0.0
    %v273 = vld [vmem:[#allocation10] sm:$0xff]
    %v274 = vld [vmem:[#allocation10 + $0x8] sm:$0xff]
    %v275 = vld [vmem:[#allocation10 + $0x10] sm:$0xff]
    %v276 = vld [vmem:[#allocation10 + $0x18] sm:$0xff]
    %v277 = vld [vmem:[%s6] sm:$0x1]
    %v279 = vlaneseq
    %v280 = vshrl.u32 %v279, 7
    %v281 = vsub.s32 0, %v280
    %v282 = vrot.slane %v277, %v281
    %vm284 = vcmask 261120
    %v286 = vsel %vm284, %v272, 0
    %288 = vmatprep.subr.mxu0 0.0
    %289 = vmatpush1.msra.mxu0 %v273
    %290 = vmatprep.subr.mxu0 0.0
    %291 = vmatpush1.msra.mxu0 %v274
    %292 = vmatprep.subr.mxu0 0.0
    %293 = vmatpush1.msra.mxu0 %v275
    %294 = vmatprep.subr.mxu0 0.0
    %295 = vmatpush1.msra.mxu0 %v276
    %296 = vmatprep.subr.mxu0 0.0
    %297 = vmatpush1.msra.mxu0 0.0
    %298 = vmatprep.subr.mxu0 0.0
    %299 = vmatpush1.msra.mxu0 0.0
    %300 = vmatprep.subr.mxu0 0.0
    %301 = vmatpush1.msra.mxu0 0.0
    %302 = vmatprep.subr.mxu0 0.0
    %303 = vmatpush1.msra.mxu0 0.0
    %304 = vmatprep.subr.mxu0 0.0
    %305 = vmatpush1.msra.mxu0 0.0
    %306 = vmatprep.subr.mxu0 0.0
    %307 = vmatpush1.msra.mxu0 0.0
    %308 = vmatprep.subr.mxu0 0.0
    %309 = vmatpush1.msra.mxu0 0.0
    %310 = vmatprep.subr.mxu0 0.0
    %311 = vmatpush1.msra.mxu0 0.0
    %312 = vmatprep.subr.mxu0 0.0
    %313 = vmatpush1.msra.mxu0 0.0
    %314 = vmatprep.subr.mxu0 0.0
    %315 = vmatpush1.msra.mxu0 0.0
    %316 = vmatprep.subr.mxu0 0.0
    %317 = vmatpush1.msra.mxu0 0.0
    %318 = vmatprep.subr.mxu0 0.0
    %319 = vmatpush1.msra.mxu0 0.0
    %320 = vmatprep.subr.mxu0 0.0
    %321 = vmatpush1.msra.mxu0 0.0
    %322 = vmatprep.subr.mxu0 0.0
    %323 = vmatpush1.msra.mxu0 0.0
    %324 = vmatprep.subr.mxu0 0.0
    %325 = vmatpush1.msra.mxu0 0.0
    %326 = vmatprep.subr.mxu0 0.0
    %327 = vmatpush1.msra.mxu0 0.0
    %328 = vmatprep.subr.mxu0 0.0
    %329 = vmatpush1.msra.mxu0 0.0
    %330 = vmatprep.subr.mxu0 0.0
    %331 = vmatpush1.msra.mxu0 0.0
    %332 = vmatprep.subr.mxu0 0.0
    %333 = vmatpush1.msra.mxu0 0.0
    %334 = vmatprep.subr.mxu0 0.0
    %335 = vmatpush1.msra.mxu0 0.0
    %336 = vmatprep.subr.mxu0 0.0
    %337 = vmatpush1.msra.mxu0 0.0
    %338 = vmatprep.subr.mxu0 0.0
    %339 = vmatpush1.msra.mxu0 0.0
    %340 = vmatprep.subr.mxu0 0.0
    %341 = vmatpush1.msra.mxu0 0.0
    %342 = vmatprep.subr.mxu0 0.0
    %343 = vmatpush1.msra.mxu0 0.0
    %344 = vmatprep.subr.mxu0 0.0
    %345 = vmatpush1.msra.mxu0 0.0
    %346 = vmatprep.subr.mxu0 0.0
    %347 = vmatpush1.msra.mxu0 0.0
    %348 = vmatprep.subr.mxu0 0.0
    %349 = vmatpush1.msra.mxu0 0.0
    %350 = vmatprep.subr.mxu0 0.0
    %351 = vmatpush1.msra.mxu0 0.0
    %352 = vmatprep.mubr.f32.mxu0 0.0
    %353 = vmatmul.mubr.f32.gmra.mrb[0].mxu0 %v286
    %v354 = vpop.f32.mrb[0].mxu0
    %v355 = vadd.f32 %v282, %v354
    %v356 = vpop.f32.mrb[0].mxu0
    %357 = vdwg.mxu0
    %v358 = vmax.f32 %v355, 0.0
    %v359 = vld [vmem:[#allocation11] sm:$0xff]
    %v360 = vld [vmem:[#allocation11 + $0x8] sm:$0xff]
    %v361 = vld [vmem:[#allocation11 + $0x10] sm:$0xff]
    %v362 = vld [vmem:[#allocation11 + $0x18] sm:$0xff]
    %v363 = vld [vmem:[%s8] sm:$0x1]
    %v365 = vlaneseq
    %v366 = vshrl.u32 %v365, 7
    %v367 = vsub.s32 0, %v366
    %v368 = vrot.slane %v363, %v367
    %v371 = vsel %vm284, %v358, 0
    %373 = vmatprep.subr.mxu0 0.0
    %374 = vmatpush1.msra.mxu0 %v359
    %375 = vmatprep.subr.mxu0 0.0
    %376 = vmatpush1.msra.mxu0 %v360
    %377 = vmatprep.subr.mxu0 0.0
    %378 = vmatpush1.msra.mxu0 %v361
    %379 = vmatprep.subr.mxu0 0.0
    %380 = vmatpush1.msra.mxu0 %v362
    %381 = vmatprep.subr.mxu0 0.0
    %382 = vmatpush1.msra.mxu0 0.0
    %383 = vmatprep.subr.mxu0 0.0
    %384 = vmatpush1.msra.mxu0 0.0
    %385 = vmatprep.subr.mxu0 0.0
    %386 = vmatpush1.msra.mxu0 0.0
    %387 = vmatprep.subr.mxu0 0.0
    %388 = vmatpush1.msra.mxu0 0.0
    %389 = vmatprep.subr.mxu0 0.0
    %390 = vmatpush1.msra.mxu0 0.0
    %391 = vmatprep.subr.mxu0 0.0
    %392 = vmatpush1.msra.mxu0 0.0
    %393 = vmatprep.subr.mxu0 0.0
    %394 = vmatpush1.msra.mxu0 0.0
    %395 = vmatprep.subr.mxu0 0.0
    %396 = vmatpush1.msra.mxu0 0.0
    %397 = vmatprep.subr.mxu0 0.0
    %398 = vmatpush1.msra.mxu0 0.0
    %399 = vmatprep.subr.mxu0 0.0
    %400 = vmatpush1.msra.mxu0 0.0
    %401 = vmatprep.subr.mxu0 0.0
    %402 = vmatpush1.msra.mxu0 0.0
    %403 = vmatprep.subr.mxu0 0.0
    %404 = vmatpush1.msra.mxu0 0.0
    %405 = vmatprep.subr.mxu0 0.0
    %406 = vmatpush1.msra.mxu0 0.0
    %407 = vmatprep.subr.mxu0 0.0
    %408 = vmatpush1.msra.mxu0 0.0
    %409 = vmatprep.subr.mxu0 0.0
    %410 = vmatpush1.msra.mxu0 0.0
    %411 = vmatprep.subr.mxu0 0.0
    %412 = vmatpush1.msra.mxu0 0.0
    %413 = vmatprep.subr.mxu0 0.0
    %414 = vmatpush1.msra.mxu0 0.0
    %415 = vmatprep.subr.mxu0 0.0
    %416 = vmatpush1.msra.mxu0 0.0
    %417 = vmatprep.subr.mxu0 0.0
    %418 = vmatpush1.msra.mxu0 0.0
    %419 = vmatprep.subr.mxu0 0.0
    %420 = vmatpush1.msra.mxu0 0.0
    %421 = vmatprep.subr.mxu0 0.0
    %422 = vmatpush1.msra.mxu0 0.0
    %423 = vmatprep.subr.mxu0 0.0
    %424 = vmatpush1.msra.mxu0 0.0
    %425 = vmatprep.subr.mxu0 0.0
    %426 = vmatpush1.msra.mxu0 0.0
    %427 = vmatprep.subr.mxu0 0.0
    %428 = vmatpush1.msra.mxu0 0.0
    %429 = vmatprep.subr.mxu0 0.0
    %430 = vmatpush1.msra.mxu0 0.0
    %431 = vmatprep.subr.mxu0 0.0
    %432 = vmatpush1.msra.mxu0 0.0
    %433 = vmatprep.subr.mxu0 0.0
    %434 = vmatpush1.msra.mxu0 0.0
    %435 = vmatprep.subr.mxu0 0.0
    %436 = vmatpush1.msra.mxu0 0.0
    %437 = vmatprep.mubr.f32.mxu0 0.0
    %438 = vmatmul.mubr.f32.gmra.mrb[0].mxu0 %v371
    %v439 = vpop.f32.mrb[0].mxu0
    %v440 = vadd.f32 %v368, %v439
    %v441 = vpop.f32.mrb[0].mxu0
    %442 = vdwg.mxu0
    %v443 = vtanh.pop %v440
    %v444 = vmul.f32 %v443, 2.0
    %445 = vst [vmem:[#allocation13] sm:$0xff] %v444
    // Predicated region
    $region62: #{tpu_custom_call.1} parent=1 // pred_check
      _
    $region63: #{tpu_custom_call.1} parent=1 // pred_check_branch
      %447 = sbr.rel (0) target = $region65
    $region64: #{tpu_custom_call.1} parent=1 // pred_region
      %s449 = ssub.s32 128, 128
      %450 = vsyncadd [#allocation4], %s449
      %s452 = sshll.u32 [#allocation13], 4
      %s453 = int_to_ptr.vmem [resolvable:$true] %s452
      %455 = dma.vmem_to_hbm [thread:$0]  %s453, 128, %s9, [#allocation4]
    $region65: #{tpu_custom_call.1} parent=1 // pred_fallthru
      _
    // Predicated region
    $region66: #{tpu_custom_call.1} parent=1 // pred_check
      _
    $region67: #{tpu_custom_call.1} parent=1 // pred_check_branch
      %457 = sbr.rel (0) target = $region69
    $region68: #{tpu_custom_call.1} parent=1 // pred_region
      %458 = dma.done [#allocation4], 128
    $region69: #{tpu_custom_call.1} parent=1 // pred_fallthru
      _
    %459 = vsyncpa [#allocation3], 1
    %460 = vsyncpa [#allocation6], 1
    %461 = vsyncpa [#allocation9], 1
    %462 = vsyncpa [#allocation12], 1
    %463 = vsyncpa [#allocation4], 1

</llo_original>
